<compile_context>
chip_gen: v7x
topology: tpu7x:2x2x1
jax: 0.10.0
libtpu: 0.0.40
codegen_flags: <defaults>
</compile_context>

<pallas_src>
import math

import jax
import jax.numpy as jnp
from jax.experimental import pallas as pl
from jax.experimental.pallas import tpu as pltpu

_SQRT_2_OVER_PI = math.sqrt(2.0 / math.pi)
_GELU_COEFF = 0.044715

_LANE = 128
_LANE_CANDIDATES = (4096, 2048, 1024, 512, 256, 128)   # preferred lane widths
_MAX_TC = 4096                                          # max cols per block
_BLOCK_BYTE_TARGET = 4 * 1024 * 1024                    # ~4 MiB / block buffer
_VMEM_LIMIT_BYTES = 48 * 1024 * 1024                    # safe on v5e/v6e/v7x


def _new_gelu_kernel(x_ref, o_ref):
    # compute in f32 for accuracy, cast back to input dtype
    xf = x_ref[...].astype(jnp.float32)
    inner = _SQRT_2_OVER_PI * (xf + _GELU_COEFF * xf * xf * xf)
    o_ref[...] = (0.5 * xf * (1.0 + jnp.tanh(inner))).astype(o_ref.dtype)


def _sublane_multiple(dtype) -> int:
    # 8 for f32, 16 for bf16/f16, 32 for 8-bit types
    itemsize = jnp.dtype(dtype).itemsize
    return max(8, 32 // max(itemsize, 1))


def _pick_2d_view(x: jax.Array) -> jax.Array:
    """Lane-dense 2D view when possible; otherwise last-dim layout. No padding."""
    n = x.size
    if n % _LANE == 0:
        for c in _LANE_CANDIDATES:
            if n % c == 0:
                return x.reshape(n // c, c)
    if x.ndim == 0:
        return x.reshape(1, 1)
    if x.ndim == 1:
        return x.reshape(1, -1)
    return x.reshape(-1, x.shape[-1])


def new_gelu(x: jax.Array) -> jax.Array:
    """Elementwise tanh-approx GELU matching NewGELUActivation.forward."""
    orig_shape = x.shape
    if x.size == 0:
        return x

    x2 = _pick_2d_view(x)
    rows, cols = x2.shape
    sub = _sublane_multiple(x.dtype)
    itemsize = jnp.dtype(x.dtype).itemsize

    # Column tile: full extent unless huge; otherwise a multiple of 128
    # (partial tail block handled by Pallas' masked block access).
    if cols <= _MAX_TC or cols < _LANE:
        tc = cols
    else:
        tc = _MAX_TC

    # Row tile from the VMEM byte budget, rounded to the sublane multiple.
    tm = _BLOCK_BYTE_TARGET // max(tc * itemsize, 1)
    tm = max(sub, (tm // sub) * sub)
    if tm >= rows:
        tm = rows
    # Megacore: prefer >= 2 grid steps along rows when there is enough work.
    if tm == rows and pl.cdiv(cols, tc) == 1 and rows >= 2 * sub:
        half = pl.cdiv(rows, 2)
        tm = ((half + sub - 1) // sub) * sub

    grid = (pl.cdiv(rows, tm), pl.cdiv(cols, tc))

    out = pl.pallas_call(
        _new_gelu_kernel,
        out_shape=jax.ShapeDtypeStruct((rows, cols), x.dtype),
        grid_spec=pltpu.PrefetchScalarGridSpec(
            num_scalar_prefetch=0,
            grid=grid,
            in_specs=[pl.BlockSpec((tm, tc), lambda i, j: (i, j))],
            out_specs=pl.BlockSpec((tm, tc), lambda i, j: (i, j)),
        ),
        compiler_params=pltpu.CompilerParams(
            dimension_semantics=("parallel", "parallel"),
            vmem_limit_bytes=_VMEM_LIMIT_BYTES,
        ),
    )(x2)

    return out.reshape(orig_shape)


def _new_gelu_ref(x):
    xf = x.astype(jnp.float32)
    y = 0.5 * xf * (
        1.0 + jnp.tanh(_SQRT_2_OVER_PI * (xf + _GELU_COEFF * jnp.power(xf, 3.0)))
    )
    return y.astype(x.dtype)


if __name__ == "__main__":
    key = jax.random.PRNGKey(0)
    # small shape consistent with elementwise activation use: (batch, seq, hidden)
    x = jax.random.normal(key, (2, 8, 32), dtype=jnp.float32)

    y = new_gelu(x)
    y = jax.block_until_ready(y)

    y_ref = _new_gelu_ref(x)
    assert y.shape == x.shape and y.dtype == x.dtype
    assert jnp.allclose(y, y_ref, atol=1e-6, rtol=1e-6), "mismatch vs reference"

    print("KERNEL_OK")
</pallas_src>

<mosaic_0001>
module attributes {stable_mosaic.version = 11 : i64} {
  func.func @_new_gelu_kernel(%arg0: i32, %arg1: i32, %arg2: memref<1x512xf32, #tpu.memory_space<vmem>>, %arg3: memref<1x512xf32, #tpu.memory_space<vmem>>) attributes {dimension_semantics = [#tpu.dimension_semantics<parallel>, #tpu.dimension_semantics<parallel>], iteration_bounds = array<i64: 1, 1>, scalar_prefetch = 0 : i64, scratch_operands = 0 : i64, tpu.core_type = #tpu.core_type<tc>, window_params = [{transform_indices = @transform_0, window_bounds = array<i64: 1, 512>}, {transform_indices = @transform_1, window_bounds = array<i64: 1, 512>}]} {
    %c0 = arith.constant 0 : index
    %c0_0 = arith.constant 0 : index
    %0 = vector.load %arg2[%c0, %c0_0] : memref<1x512xf32, #tpu.memory_space<vmem>>, vector<1x512xf32>
    %cst = arith.constant 4.471500e-02 : f32
    %1 = vector.broadcast %cst : f32 to vector<1x512xf32>
    %2 = arith.mulf %1, %0 : vector<1x512xf32>
    %3 = arith.mulf %2, %0 : vector<1x512xf32>
    %4 = arith.mulf %3, %0 : vector<1x512xf32>
    %5 = arith.addf %0, %4 : vector<1x512xf32>
    %cst_1 = arith.constant 0.797884583 : f32
    %6 = vector.broadcast %cst_1 : f32 to vector<1x512xf32>
    %7 = arith.mulf %6, %5 : vector<1x512xf32>
    %cst_2 = arith.constant 5.000000e-01 : f32
    %8 = vector.broadcast %cst_2 : f32 to vector<1x512xf32>
    %9 = arith.mulf %8, %0 : vector<1x512xf32>
    %10 = math.tanh %7 : vector<1x512xf32>
    %cst_3 = arith.constant 1.000000e+00 : f32
    %11 = vector.broadcast %cst_3 : f32 to vector<1x512xf32>
    %12 = arith.addf %11, %10 : vector<1x512xf32>
    %13 = arith.mulf %9, %12 : vector<1x512xf32>
    %c0_4 = arith.constant 0 : index
    %c0_5 = arith.constant 0 : index
    %14 = vector.load %arg3[%c0_4, %c0_5] : memref<1x512xf32, #tpu.memory_space<vmem>>, vector<1x512xf32>
    tpu.vector_store %arg3[%c0_4, %c0_5], %13 {strides = array<i32>} : memref<1x512xf32, #tpu.memory_space<vmem>>, vector<1x512xf32>,
    return
  }
  func.func @transform_0(%arg0: i32, %arg1: i32) -> (i32, i32) {
    %c0_i32 = arith.constant 0 : i32
    return %arg0, %arg1 : i32, i32
  }
  func.func @transform_1(%arg0: i32, %arg1: i32) -> (i32, i32) {
    %c0_i32 = arith.constant 0 : i32
    return %arg0, %arg1 : i32, i32
  }
}

</mosaic_0001>

<llo_original>
// kernel: tpu_custom_call.1
$region0: #{tpu_custom_call.1}
  #allocation0 [shape = 'u32[]', space=smem, size = 0x4, offset = 0x4, fixed_abs, tag = 'smem constant byte address 0x4 - core index']
  #allocation1 [shape = 'u32[144,128]{1,0:T(1,128)}', space=vmem, size = 0x12000, scoped, tag = 'internal scratch']
  %s0 = inlined_call_operand.hbm [shape: f32[1,512], index: 0, kind: input, shape index: {}]
  %s1 = inlined_call_operand.hbm [shape: f32[1,512], index: 1, kind: output, shape index: {}]
  %s2 = sld [smem:[#allocation0]]
  $region18: #{tpu_custom_call.1} parent=0
    _
  %s4 = ssub.s32 1, %s2
  %s5 = scalar_select 0, %s4, %s2
  $region1: #{tpu_custom_call.1} parent=0
    #allocation2 [shape = 'u8[2048]{0}', space=vmem, size = 0x800, scoped, tag = 'input window, operand 0, single buffered']
    #allocation3 [shape = 's32[1]{0}', space=sflag, size = 0x4, scoped, tag = 'scoped memory for tpu_custom_call.1']
    #allocation4 [shape = 's32[1]{0}', space=sflag, size = 0x4, scoped, tag = 'scoped memory for tpu_custom_call.1']
    #allocation5 [shape = 'u8[2048]{0}', space=vmem, size = 0x800, scoped, tag = 'output window, operand 0, single buffered']
    %6 = vsyncpa [#allocation3], 0
    %7 = vsyncpa [#allocation4], 0
    // Predicated region
    $region2: #{tpu_custom_call.1} parent=1 // pred_check
      _
    $region3: #{tpu_custom_call.1} parent=1 // pred_check_branch
      %9 = sbr.rel (0) target = $region5
    $region4: #{tpu_custom_call.1} parent=1 // pred_region
      %s11 = ssub.s32 64, 64
      %12 = vsyncadd [#allocation3], %s11
      %s14 = sshll.u32 [#allocation2], 4
      %s15 = int_to_ptr.vmem [resolvable:$true] %s14
      %17 = dma.hbm_to_vmem [thread:$0]  %s0, 64, %s15, [#allocation3]
    $region5: #{tpu_custom_call.1} parent=1 // pred_fallthru
      _
    // Predicated region
    $region6: #{tpu_custom_call.1} parent=1 // pred_check
      _
    $region7: #{tpu_custom_call.1} parent=1 // pred_check_branch
      %19 = sbr.rel (0) target = $region9
    $region8: #{tpu_custom_call.1} parent=1 // pred_region
      %20 = dma.done [#allocation3], 64
    $region9: #{tpu_custom_call.1} parent=1 // pred_fallthru
      _
    %v21 = vld [vmem:[#allocation2] sm:$0xf]
    %v22 = vmul.f32 %v21, 0.044715
    %v23 = vmul.f32 %v22, %v21
    %v24 = vmul.f32 %v23, %v21
    %v25 = vadd.f32 %v21, %v24
    %v26 = vmul.f32 %v25, 0.7978846
    %v27 = vmul.f32 %v21, 0.5
    %v28 = vtanh.pop %v26
    %v29 = vadd.f32 %v28, 1.0
    %v30 = vmul.f32 %v27, %v29
    %v31 = vlaneseq
    %vm32 = vcmp.ge.s32.totalorder %v31, 0
    %vm33 = vcmp.lt.s32.totalorder %v31, 512
    %vm34 = vmand %vm32, %vm33
    %35 = vst.msk [vmem:[#allocation5] sm:$0xf] %vm34, %v30
    // Predicated region
    $region10: #{tpu_custom_call.1} parent=1 // pred_check
      _
    $region11: #{tpu_custom_call.1} parent=1 // pred_check_branch
      %37 = sbr.rel (0) target = $region13
    $region12: #{tpu_custom_call.1} parent=1 // pred_region
      %s39 = ssub.s32 64, 64
      %40 = vsyncadd [#allocation4], %s39
      %s42 = sshll.u32 [#allocation5], 4
      %s43 = int_to_ptr.vmem [resolvable:$true] %s42
      %45 = dma.vmem_to_hbm [thread:$0]  %s43, 64, %s1, [#allocation4]
    $region13: #{tpu_custom_call.1} parent=1 // pred_fallthru
      _
    // Predicated region
    $region14: #{tpu_custom_call.1} parent=1 // pred_check
      _
    $region15: #{tpu_custom_call.1} parent=1 // pred_check_branch
      %47 = sbr.rel (0) target = $region17
    $region16: #{tpu_custom_call.1} parent=1 // pred_region
      %48 = dma.done [#allocation4], 64
    $region17: #{tpu_custom_call.1} parent=1 // pred_fallthru
      _
    %49 = vsyncpa [#allocation3], 1
    %50 = vsyncpa [#allocation4], 1

</llo_original>
